<compile_context>
chip_gen: v7x
topology: tpu7x:2x2x1
jax: 0.10.0
libtpu: 0.0.40
codegen_flags: <defaults>
</compile_context>

<pallas_src>
import functools
import math

import jax
import jax.numpy as jnp
from jax.experimental import pallas as pl
from jax.experimental.pallas import tpu as pltpu

_LANE = 128
_EPS = 1e-8
_MAX_DCHUNK = 1024          # lanes per D chunk when D itself has to be tiled


def _cosine_distance_kernel(x_ref, y_ref, o_ref, dot_acc, xx_acc, yy_acc, *,
                            d_total, dchunk, single_chunk):
    """Grid = (row tiles [parallel], D chunks [arbitrary]).

    x_ref/y_ref: (tile, dchunk) input blocks; o_ref: (1, rb, 128) lane-dense
    result slab with tile == rb * 128; dot/xx/yy: (rb, 128) f32 VMEM scratch
    accumulators that live across the innermost D-chunk axis.
    """
    rb = o_ref.shape[1]
    dc = x_ref.shape[1]

    x = x_ref[...].astype(jnp.float32)
    y = y_ref[...].astype(jnp.float32)

    if d_total % dchunk != 0:
        # Only the ragged huge-D case pays for masking the stale lanes of the
        # partial trailing chunk (static Python branch, zero cost otherwise).
        col = (jax.lax.broadcasted_iota(jnp.int32, x.shape, 1)
               + pl.program_id(1) * dchunk)
        valid = col < d_total
        x = jnp.where(valid, x, 0.0)
        y = jnp.where(valid, y, 0.0)

    # Splitting the leading (sublane) dim is a free, layout-preserving
    # reshape; the lane reductions below then feed the (rb, 128) slab.
    x = x.reshape(rb, _LANE, dc)
    y = y.reshape(rb, _LANE, dc)
    dot = jnp.sum(x * y, axis=-1)
    sxx = jnp.sum(x * x, axis=-1)
    syy = jnp.sum(y * y, axis=-1)

    eps2 = jnp.float32(_EPS * _EPS)

    def _finish(dot_v, sxx_v, syy_v):
        # max(||x||,eps)*max(||y||,eps) == sqrt(max(sxx,eps^2)*max(syy,eps^2))
        inv = jax.lax.rsqrt(jnp.maximum(sxx_v, eps2) * jnp.maximum(syy_v, eps2))  # EUP
        o_ref[...] = (jnp.float32(1.0) - dot_v * inv)[None]

    if single_chunk:
        # Common case (D <= _MAX_DCHUNK): no scratch round-trip at all.
        _finish(dot, sxx, syy)
    else:
        k = pl.program_id(1)

        @pl.when(k == 0)
        def _():
            dot_acc[...] = jnp.zeros_like(dot_acc)
            xx_acc[...] = jnp.zeros_like(xx_acc)
            yy_acc[...] = jnp.zeros_like(yy_acc)

        dot_acc[...] += dot
        xx_acc[...] += sxx
        yy_acc[...] += syy

        @pl.when(k == pl.num_programs(1) - 1)
        def _():
            _finish(dot_acc[...], xx_acc[...], yy_acc[...])


def _block_budget():
    """Scoped-VMEM limit + per-input, per-step HBM block target (bytes)."""
    try:
        cap = int(pltpu.get_tpu_info().vmem_capacity_bytes)
    except Exception:  # host-side introspection only; never hides a lowering error
        cap = 128 * 1024 * 1024            # v5e/v6e physical VMEM
    vmem_limit = min((cap * 3) // 4, 96 * 1024 * 1024)
    # 2 inputs x 2 pipeline buffers plus ~3 f32-wide product temporaries share
    # vmem_limit; /10 lands at ~8 MiB/input on v5e/v6e (96 MiB limit) and
    # ~4.8 MiB/input on v7x (48 MiB limit), matching the review's roofline
    # targets while leaving headroom for Mosaic-internal scratch.
    block_bytes = max(1 << 20, min(vmem_limit // 10, 8 << 20))
    return vmem_limit, block_bytes


def cosine_distance(x, y):
    """1 - cosine_similarity(x, y) along the last axis (PyTorch semantics)."""
    assert x.shape == y.shape, "identical shapes assumed (no broadcasting)"
    lead = x.shape[:-1]
    d = x.shape[-1]
    n = math.prod(lead)
    out_dtype = jnp.promote_types(x.dtype, y.dtype)

    if n == 0:
        return jnp.zeros(lead, out_dtype)
    if d == 0:
        # dot = 0, norms clamp to eps -> cosine 0 -> distance 1.
        return jnp.ones(lead, out_dtype)

    x2 = x.reshape(n, d)
    y2 = y.reshape(n, d)

    vmem_limit, block_bytes = _block_budget()
    itemsize = max(jnp.dtype(x.dtype).itemsize, jnp.dtype(y.dtype).itemsize)

    # D tiling: a single chunk whenever it fits (no masking needed; Mosaic
    # handles lane padding of a non-128-multiple D); otherwise 128-aligned
    # chunks with the partial trailing chunk masked in-kernel.
    single_chunk = d <= _MAX_DCHUNK
    dchunk = d if single_chunk else _MAX_DCHUNK
    nd = 1 if single_chunk else pl.cdiv(d, dchunk)

    # Row tile from the VMEM budget.  The VMEM footprint per row is governed
    # by the lane-padded chunk width and the f32 temporaries, not by the raw
    # HBM bytes, so budget against 128-lane padding and max(itemsize, 4).
    lanes_pad = pl.cdiv(dchunk, _LANE) * _LANE
    per_row = lanes_pad * max(itemsize, 4)
    rows_budget = max(_LANE, ((block_bytes // per_row) // _LANE) * _LANE)

    n_pad = pl.cdiv(n, _LANE) * _LANE
    tile = min(rows_budget, n_pad)
    if n_pad >= 4 * _LANE:
        # Keep >= ~4 row-grid steps: BlockSpec double-buffering reaches steady
        # state, and a v7x megacore split still gives each core >= 2 steps.
        tile = min(tile, max(_LANE, pl.cdiv(pl.cdiv(n_pad, 4), _LANE) * _LANE))

    if n < tile:
        # Only tiny inputs (less than one tile) get padded; larger inputs use
        # a non-divisible row grid (stale boundary rows are per-row independent
        # and sliced off below).
        x2 = jnp.pad(x2, ((0, tile - n), (0, 0)))
        y2 = jnp.pad(y2, ((0, tile - n), (0, 0)))

    grid_rows = pl.cdiv(max(n, tile), tile)
    rb = tile // _LANE

    kernel = functools.partial(_cosine_distance_kernel, d_total=d,
                               dchunk=dchunk, single_chunk=single_chunk)
    out = pl.pallas_call(
        kernel,
        out_shape=jax.ShapeDtypeStruct((grid_rows, rb, _LANE), jnp.float32),
        grid=(grid_rows, nd),
        in_specs=[
            pl.BlockSpec((tile, dchunk), lambda i, k: (i, k)),
            pl.BlockSpec((tile, dchunk), lambda i, k: (i, k)),
        ],
        # 3-D output: the last two block dims (rb, 128) always satisfy the
        # (8, 128) tiling constraint, every store is lane-dense, and the block
        # is revisited (accumulator-resident) across the D-chunk axis.
        out_specs=pl.BlockSpec((1, rb, _LANE), lambda i, k: (i, 0, 0)),
        scratch_shapes=[pltpu.VMEM((rb, _LANE), jnp.float32)] * 3,
        compiler_params=pltpu.CompilerParams(
            dimension_semantics=("parallel", "arbitrary"),
            vmem_limit_bytes=vmem_limit),
    )(x2, y2)

    res = out.reshape(-1)[:n]
    return res.reshape(lead).astype(out_dtype)


def _reference(x, y, eps=_EPS):
    x = x.astype(jnp.float32)
    y = y.astype(jnp.float32)
    dot = jnp.sum(x * y, axis=-1)
    nx = jnp.sqrt(jnp.sum(x * x, axis=-1))
    ny = jnp.sqrt(jnp.sum(y * y, axis=-1))
    return 1.0 - dot / (jnp.maximum(nx, eps) * jnp.maximum(ny, eps))


if __name__ == "__main__":
    key = jax.random.PRNGKey(0)
    kx, ky = jax.random.split(key)
    # small shapes: batch=2, seq=8, hidden=32; reduction over hidden (last axis)
    x = jax.random.normal(kx, (2, 8, 32), dtype=jnp.float32)
    y = jax.random.normal(ky, (2, 8, 32), dtype=jnp.float32)

    out = jax.block_until_ready(cosine_distance(x, y))

    ref = _reference(x, y)
    assert out.shape == ref.shape == (2, 8)
    assert jnp.allclose(out, ref, atol=1e-5, rtol=1e-5)

    print("KERNEL_OK")
</pallas_src>

<mosaic_0001>
module attributes {stable_mosaic.version = 11 : i64} {
  func.func @_cosine_distance_kernel(%arg0: i32, %arg1: i32, %arg2: memref<128x32xf32, #tpu.memory_space<vmem>>, %arg3: memref<128x32xf32, #tpu.memory_space<vmem>>, %arg4: memref<1x1x128xf32, #tpu.memory_space<vmem>>, %arg5: memref<1x128xf32, #tpu.memory_space<vmem>>, %arg6: memref<1x128xf32, #tpu.memory_space<vmem>>, %arg7: memref<1x128xf32, #tpu.memory_space<vmem>>) attributes {dimension_semantics = [#tpu.dimension_semantics<parallel>, #tpu.dimension_semantics<arbitrary>], iteration_bounds = array<i64: 1, 1>, scalar_prefetch = 0 : i64, scratch_operands = 3 : i64, tpu.core_type = #tpu.core_type<tc>, window_params = [{transform_indices = @transform_0, window_bounds = array<i64: 128, 32>}, {transform_indices = @transform_1, window_bounds = array<i64: 128, 32>}, {transform_indices = @transform_2, window_bounds = array<i64: 1, 1, 128>}]} {
    %c0 = arith.constant 0 : index
    %c0_0 = arith.constant 0 : index
    %0 = vector.load %arg2[%c0, %c0_0] : memref<128x32xf32, #tpu.memory_space<vmem>>, vector<128x32xf32>
    %c0_1 = arith.constant 0 : index
    %c0_2 = arith.constant 0 : index
    %1 = vector.load %arg3[%c0_1, %c0_2] : memref<128x32xf32, #tpu.memory_space<vmem>>, vector<128x32xf32>
    %2 = vector.shape_cast %0 : vector<128x32xf32> to vector<1x128x32xf32>
    %3 = vector.shape_cast %1 : vector<128x32xf32> to vector<1x128x32xf32>
    %4 = arith.mulf %2, %3 : vector<1x128x32xf32>
    %cst = arith.constant dense<0.000000e+00> : vector<1x128xf32>
    %5 = vector.multi_reduction <add>, %4, %cst [2] : vector<1x128x32xf32> to vector<1x128xf32>
    %6 = arith.mulf %2, %2 : vector<1x128x32xf32>
    %cst_3 = arith.constant dense<0.000000e+00> : vector<1x128xf32>
    %7 = vector.multi_reduction <add>, %6, %cst_3 [2] : vector<1x128x32xf32> to vector<1x128xf32>
    %8 = arith.mulf %3, %3 : vector<1x128x32xf32>
    %cst_4 = arith.constant dense<0.000000e+00> : vector<1x128xf32>
    %9 = vector.multi_reduction <add>, %8, %cst_4 [2] : vector<1x128x32xf32> to vector<1x128xf32>
    %cst_5 = arith.constant 1.000000e-16 : f32
    %10 = vector.broadcast %cst_5 : f32 to vector<1x128xf32>
    %11 = arith.maximumf %7, %10 : vector<1x128xf32>
    %cst_6 = arith.constant 1.000000e-16 : f32
    %12 = vector.broadcast %cst_6 : f32 to vector<1x128xf32>
    %13 = arith.maximumf %9, %12 : vector<1x128xf32>
    %14 = arith.mulf %11, %13 : vector<1x128xf32>
    %15 = math.rsqrt %14 : vector<1x128xf32>
    %16 = arith.mulf %5, %15 : vector<1x128xf32>
    %cst_7 = arith.constant 1.000000e+00 : f32
    %17 = vector.broadcast %cst_7 : f32 to vector<1x128xf32>
    %18 = arith.subf %17, %16 : vector<1x128xf32>
    %19 = vector.shape_cast %18 : vector<1x128xf32> to vector<1x1x128xf32>
    %c0_8 = arith.constant 0 : index
    %c0_9 = arith.constant 0 : index
    %c0_10 = arith.constant 0 : index
    %20 = vector.load %arg4[%c0_8, %c0_9, %c0_10] : memref<1x1x128xf32, #tpu.memory_space<vmem>>, vector<1x1x128xf32>
    tpu.vector_store %arg4[%c0_8, %c0_9, %c0_10], %19 {strides = array<i32>} : memref<1x1x128xf32, #tpu.memory_space<vmem>>, vector<1x1x128xf32>,
    return
  }
  func.func @transform_0(%arg0: i32, %arg1: i32) -> (i32, i32) {
    %c0_i32 = arith.constant 0 : i32
    return %arg0, %arg1 : i32, i32
  }
  func.func @transform_1(%arg0: i32, %arg1: i32) -> (i32, i32) {
    %c0_i32 = arith.constant 0 : i32
    return %arg0, %arg1 : i32, i32
  }
  func.func @transform_2(%arg0: i32, %arg1: i32) -> (i32, i32, i32) {
    %c0_i32 = arith.constant 0 : i32
    %c0_i32_0 = arith.constant 0 : i32
    %c0_i32_1 = arith.constant 0 : i32
    return %arg0, %c0_i32, %c0_i32_0 : i32, i32, i32
  }
}

</mosaic_0001>

<llo_original>
// kernel: tpu_custom_call.1
$region0: #{tpu_custom_call.1}
  #allocation0 [shape = 'u32[]', space=smem, size = 0x4, offset = 0x4, fixed_abs, tag = 'smem constant byte address 0x4 - core index']
  #allocation1 [shape = 'u32[144,128]{1,0:T(1,128)}', space=vmem, size = 0x12000, scoped, tag = 'internal scratch']
  #allocation2 [shape = 'f32[1,128]{1,0:T(1,128)}', space=vmem, size = 0x200, scoped, tag = 'scratch operand']
  #allocation3 [shape = 'f32[1,128]{1,0:T(1,128)}', space=vmem, size = 0x200, scoped, tag = 'scratch operand']
  #allocation4 [shape = 'f32[1,128]{1,0:T(1,128)}', space=vmem, size = 0x200, scoped, tag = 'scratch operand']
  %s0 = inlined_call_operand.hbm [shape: f32[128,32], index: 0, kind: input, shape index: {}]
  %s1 = inlined_call_operand.hbm [shape: f32[128,32], index: 1, kind: input, shape index: {}]
  %s2 = inlined_call_operand.hbm [shape: f32[1,1,128], index: 2, kind: output, shape index: {}]
  %s3 = sld [smem:[#allocation0]]
  $region26: #{tpu_custom_call.1} parent=0
    _
  %s5 = ssub.s32 1, %s3
  %s6 = scalar_select 0, %s5, %s3
  $region1: #{tpu_custom_call.1} parent=0
    #allocation5 [shape = 'u8[65536]{0}', space=vmem, size = 0x10000, scoped, tag = 'input window, operand 0, single buffered']
    #allocation6 [shape = 's32[1]{0}', space=sflag, size = 0x4, scoped, tag = 'scoped memory for tpu_custom_call.1']
    #allocation7 [shape = 's32[1]{0}', space=sflag, size = 0x4, scoped, tag = 'scoped memory for tpu_custom_call.1']
    #allocation8 [shape = 'u8[65536]{0}', space=vmem, size = 0x10000, scoped, tag = 'input window, operand 1, single buffered']
    #allocation9 [shape = 's32[1]{0}', space=sflag, size = 0x4, scoped, tag = 'scoped memory for tpu_custom_call.1']
    #allocation10 [shape = 'u8[512]{0}', space=vmem, size = 0x400, scoped, tag = 'output window, operand 0, single buffered']
    %7 = vsyncpa [#allocation6], 0
    %8 = vsyncpa [#allocation9], 0
    %9 = vsyncpa [#allocation7], 0
    // Predicated region
    $region2: #{tpu_custom_call.1} parent=1 // pred_check
      _
    $region3: #{tpu_custom_call.1} parent=1 // pred_check_branch
      %11 = sbr.rel (0) target = $region5
    $region4: #{tpu_custom_call.1} parent=1 // pred_region
      %s13 = ssub.s32 2048, 2048
      %14 = vsyncadd [#allocation6], %s13
      %s15 = sshll.u32 [#allocation5], 4
      %s16 = int_to_ptr.vmem [resolvable:$true] %s15
      %21 = dma.hbm_to_vmem [thread:$0]  %s0, 2048, %s16, [#allocation6], 128, 128, 8
    $region5: #{tpu_custom_call.1} parent=1 // pred_fallthru
      _
    // Predicated region
    $region6: #{tpu_custom_call.1} parent=1 // pred_check
      _
    $region7: #{tpu_custom_call.1} parent=1 // pred_check_branch
      %23 = sbr.rel (0) target = $region9
    $region8: #{tpu_custom_call.1} parent=1 // pred_region
      %s25 = ssub.s32 2048, 2048
      %26 = vsyncadd [#allocation9], %s25
      %s27 = sshll.u32 [#allocation8], 4
      %s28 = int_to_ptr.vmem [resolvable:$true] %s27
      %33 = dma.hbm_to_vmem [thread:$0]  %s1, 2048, %s28, [#allocation9], 128, 128, 8
    $region9: #{tpu_custom_call.1} parent=1 // pred_fallthru
      _
    // Predicated region
    $region10: #{tpu_custom_call.1} parent=1 // pred_check
      _
    $region11: #{tpu_custom_call.1} parent=1 // pred_check_branch
      %35 = sbr.rel (0) target = $region13
    $region12: #{tpu_custom_call.1} parent=1 // pred_region
      %36 = dma.done [#allocation6], 2048
    $region13: #{tpu_custom_call.1} parent=1 // pred_fallthru
      _
    // Predicated region
    $region14: #{tpu_custom_call.1} parent=1 // pred_check
      _
    $region15: #{tpu_custom_call.1} parent=1 // pred_check_branch
      %38 = sbr.rel (0) target = $region17
    $region16: #{tpu_custom_call.1} parent=1 // pred_region
      %39 = dma.done [#allocation9], 2048
    $region17: #{tpu_custom_call.1} parent=1 // pred_fallthru
      _
    %v40 = vld [vmem:[#allocation5] sm:$0xff]
    %v41 = vld [vmem:[#allocation5 + $0x8] sm:$0xff]
    %v42 = vld [vmem:[#allocation5 + $0x10] sm:$0xff]
    %v43 = vld [vmem:[#allocation5 + $0x18] sm:$0xff]
    %v44 = vld [vmem:[#allocation5 + $0x20] sm:$0xff]
    %v45 = vld [vmem:[#allocation5 + $0x28] sm:$0xff]
    %v46 = vld [vmem:[#allocation5 + $0x30] sm:$0xff]
    %v47 = vld [vmem:[#allocation5 + $0x38] sm:$0xff]
    %v48 = vld [vmem:[#allocation5 + $0x40] sm:$0xff]
    %v49 = vld [vmem:[#allocation5 + $0x48] sm:$0xff]
    %v50 = vld [vmem:[#allocation5 + $0x50] sm:$0xff]
    %v51 = vld [vmem:[#allocation5 + $0x58] sm:$0xff]
    %v52 = vld [vmem:[#allocation5 + $0x60] sm:$0xff]
    %v53 = vld [vmem:[#allocation5 + $0x68] sm:$0xff]
    %v54 = vld [vmem:[#allocation5 + $0x70] sm:$0xff]
    %v55 = vld [vmem:[#allocation5 + $0x78] sm:$0xff]
    %v56 = vld [vmem:[#allocation8] sm:$0xff]
    %v57 = vld [vmem:[#allocation8 + $0x8] sm:$0xff]
    %v58 = vld [vmem:[#allocation8 + $0x10] sm:$0xff]
    %v59 = vld [vmem:[#allocation8 + $0x18] sm:$0xff]
    %v60 = vld [vmem:[#allocation8 + $0x20] sm:$0xff]
    %v61 = vld [vmem:[#allocation8 + $0x28] sm:$0xff]
    %v62 = vld [vmem:[#allocation8 + $0x30] sm:$0xff]
    %v63 = vld [vmem:[#allocation8 + $0x38] sm:$0xff]
    %v64 = vld [vmem:[#allocation8 + $0x40] sm:$0xff]
    %v65 = vld [vmem:[#allocation8 + $0x48] sm:$0xff]
    %v66 = vld [vmem:[#allocation8 + $0x50] sm:$0xff]
    %v67 = vld [vmem:[#allocation8 + $0x58] sm:$0xff]
    %v68 = vld [vmem:[#allocation8 + $0x60] sm:$0xff]
    %v69 = vld [vmem:[#allocation8 + $0x68] sm:$0xff]
    %v70 = vld [vmem:[#allocation8 + $0x70] sm:$0xff]
    %v71 = vld [vmem:[#allocation8 + $0x78] sm:$0xff]
    %v72 = vmul.f32 %v40, %v56
    %v73 = vmul.f32 %v41, %v57
    %v74 = vmul.f32 %v42, %v58
    %v75 = vmul.f32 %v43, %v59
    %v76 = vmul.f32 %v44, %v60
    %v77 = vmul.f32 %v45, %v61
    %v78 = vmul.f32 %v46, %v62
    %v79 = vmul.f32 %v47, %v63
    %v80 = vmul.f32 %v48, %v64
    %v81 = vmul.f32 %v49, %v65
    %v82 = vmul.f32 %v50, %v66
    %v83 = vmul.f32 %v51, %v67
    %v84 = vmul.f32 %v52, %v68
    %v85 = vmul.f32 %v53, %v69
    %v86 = vmul.f32 %v54, %v70
    %v87 = vmul.f32 %v55, %v71
    %vm88 = vcmask 261120
    %v89 = vsel %vm88, %v72, 0.0
    %90 = vadd.xlane.f32.xlu0 %v89
    %v91 = vpop.xlane.xlu0 %90
    %v92 = vsel %vm88, %v73, 0.0
    %93 = vadd.xlane.f32.xlu0 %v92
    %v94 = vpop.xlane.xlu0 %93
    %v95 = vsel %vm88, %v74, 0.0
    %96 = vadd.xlane.f32.xlu0 %v95
    %v97 = vpop.xlane.xlu0 %96
    %v98 = vsel %vm88, %v75, 0.0
    %99 = vadd.xlane.f32.xlu0 %v98
    %v100 = vpop.xlane.xlu0 %99
    %v101 = vsel %vm88, %v76, 0.0
    %102 = vadd.xlane.f32.xlu0 %v101
    %v103 = vpop.xlane.xlu0 %102
    %v104 = vsel %vm88, %v77, 0.0
    %105 = vadd.xlane.f32.xlu0 %v104
    %v106 = vpop.xlane.xlu0 %105
    %v107 = vsel %vm88, %v78, 0.0
    %108 = vadd.xlane.f32.xlu0 %v107
    %v109 = vpop.xlane.xlu0 %108
    %v110 = vsel %vm88, %v79, 0.0
    %111 = vadd.xlane.f32.xlu0 %v110
    %v112 = vpop.xlane.xlu0 %111
    %v113 = vsel %vm88, %v80, 0.0
    %114 = vadd.xlane.f32.xlu0 %v113
    %v115 = vpop.xlane.xlu0 %114
    %v116 = vsel %vm88, %v81, 0.0
    %117 = vadd.xlane.f32.xlu0 %v116
    %v118 = vpop.xlane.xlu0 %117
    %v119 = vsel %vm88, %v82, 0.0
    %120 = vadd.xlane.f32.xlu0 %v119
    %v121 = vpop.xlane.xlu0 %120
    %v122 = vsel %vm88, %v83, 0.0
    %123 = vadd.xlane.f32.xlu0 %v122
    %v124 = vpop.xlane.xlu0 %123
    %v125 = vsel %vm88, %v84, 0.0
    %126 = vadd.xlane.f32.xlu0 %v125
    %v127 = vpop.xlane.xlu0 %126
    %v128 = vsel %vm88, %v85, 0.0
    %129 = vadd.xlane.f32.xlu0 %v128
    %v130 = vpop.xlane.xlu0 %129
    %v131 = vsel %vm88, %v86, 0.0
    %132 = vadd.xlane.f32.xlu0 %v131
    %v133 = vpop.xlane.xlu0 %132
    %v134 = vsel %vm88, %v87, 0.0
    %135 = vadd.xlane.f32.xlu0 %v134
    %v136 = vpop.xlane.xlu0 %135
    %v137 = vmul.f32 %v40, %v40
    %v138 = vmul.f32 %v41, %v41
    %v139 = vmul.f32 %v42, %v42
    %v140 = vmul.f32 %v43, %v43
    %v141 = vmul.f32 %v44, %v44
    %v142 = vmul.f32 %v45, %v45
    %v143 = vmul.f32 %v46, %v46
    %v144 = vmul.f32 %v47, %v47
    %v145 = vmul.f32 %v48, %v48
    %v146 = vmul.f32 %v49, %v49
    %v147 = vmul.f32 %v50, %v50
    %v148 = vmul.f32 %v51, %v51
    %v149 = vmul.f32 %v52, %v52
    %v150 = vmul.f32 %v53, %v53
    %v151 = vmul.f32 %v54, %v54
    %v152 = vmul.f32 %v55, %v55
    %v153 = vsel %vm88, %v137, 0.0
    %154 = vadd.xlane.f32.xlu0 %v153
    %v155 = vpop.xlane.xlu0 %154
    %v156 = vsel %vm88, %v138, 0.0
    %157 = vadd.xlane.f32.xlu0 %v156
    %v158 = vpop.xlane.xlu0 %157
    %v159 = vsel %vm88, %v139, 0.0
    %160 = vadd.xlane.f32.xlu0 %v159
    %v161 = vpop.xlane.xlu0 %160
    %v162 = vsel %vm88, %v140, 0.0
    %163 = vadd.xlane.f32.xlu0 %v162
    %v164 = vpop.xlane.xlu0 %163
    %v165 = vsel %vm88, %v141, 0.0
    %166 = vadd.xlane.f32.xlu0 %v165
    %v167 = vpop.xlane.xlu0 %166
    %v168 = vsel %vm88, %v142, 0.0
    %169 = vadd.xlane.f32.xlu0 %v168
    %v170 = vpop.xlane.xlu0 %169
    %v171 = vsel %vm88, %v143, 0.0
    %172 = vadd.xlane.f32.xlu0 %v171
    %v173 = vpop.xlane.xlu0 %172
    %v174 = vsel %vm88, %v144, 0.0
    %175 = vadd.xlane.f32.xlu0 %v174
    %v176 = vpop.xlane.xlu0 %175
    %v177 = vsel %vm88, %v145, 0.0
    %178 = vadd.xlane.f32.xlu0 %v177
    %v179 = vpop.xlane.xlu0 %178
    %v180 = vsel %vm88, %v146, 0.0
    %181 = vadd.xlane.f32.xlu0 %v180
    %v182 = vpop.xlane.xlu0 %181
    %v183 = vsel %vm88, %v147, 0.0
    %184 = vadd.xlane.f32.xlu0 %v183
    %v185 = vpop.xlane.xlu0 %184
    %v186 = vsel %vm88, %v148, 0.0
    %187 = vadd.xlane.f32.xlu0 %v186
    %v188 = vpop.xlane.xlu0 %187
    %v189 = vsel %vm88, %v149, 0.0
    %190 = vadd.xlane.f32.xlu0 %v189
    %v191 = vpop.xlane.xlu0 %190
    %v192 = vsel %vm88, %v150, 0.0
    %193 = vadd.xlane.f32.xlu0 %v192
    %v194 = vpop.xlane.xlu0 %193
    %v195 = vsel %vm88, %v151, 0.0
    %196 = vadd.xlane.f32.xlu0 %v195
    %v197 = vpop.xlane.xlu0 %196
    %v198 = vsel %vm88, %v152, 0.0
    %199 = vadd.xlane.f32.xlu0 %v198
    %v200 = vpop.xlane.xlu0 %199
    %v201 = vmul.f32 %v56, %v56
    %v202 = vmul.f32 %v57, %v57
    %v203 = vmul.f32 %v58, %v58
    %v204 = vmul.f32 %v59, %v59
    %v205 = vmul.f32 %v60, %v60
    %v206 = vmul.f32 %v61, %v61
    %v207 = vmul.f32 %v62, %v62
    %v208 = vmul.f32 %v63, %v63
    %v209 = vmul.f32 %v64, %v64
    %v210 = vmul.f32 %v65, %v65
    %v211 = vmul.f32 %v66, %v66
    %v212 = vmul.f32 %v67, %v67
    %v213 = vmul.f32 %v68, %v68
    %v214 = vmul.f32 %v69, %v69
    %v215 = vmul.f32 %v70, %v70
    %v216 = vmul.f32 %v71, %v71
    %v217 = vsel %vm88, %v201, 0.0
    %218 = vadd.xlane.f32.xlu0 %v217
    %v219 = vpop.xlane.xlu0 %218
    %v220 = vsel %vm88, %v202, 0.0
    %221 = vadd.xlane.f32.xlu0 %v220
    %v222 = vpop.xlane.xlu0 %221
    %v223 = vsel %vm88, %v203, 0.0
    %224 = vadd.xlane.f32.xlu0 %v223
    %v225 = vpop.xlane.xlu0 %224
    %v226 = vsel %vm88, %v204, 0.0
    %227 = vadd.xlane.f32.xlu0 %v226
    %v228 = vpop.xlane.xlu0 %227
    %v229 = vsel %vm88, %v205, 0.0
    %230 = vadd.xlane.f32.xlu0 %v229
    %v231 = vpop.xlane.xlu0 %230
    %v232 = vsel %vm88, %v206, 0.0
    %233 = vadd.xlane.f32.xlu0 %v232
    %v234 = vpop.xlane.xlu0 %233
    %v235 = vsel %vm88, %v207, 0.0
    %236 = vadd.xlane.f32.xlu0 %v235
    %v237 = vpop.xlane.xlu0 %236
    %v238 = vsel %vm88, %v208, 0.0
    %239 = vadd.xlane.f32.xlu0 %v238
    %v240 = vpop.xlane.xlu0 %239
    %v241 = vsel %vm88, %v209, 0.0
    %242 = vadd.xlane.f32.xlu0 %v241
    %v243 = vpop.xlane.xlu0 %242
    %v244 = vsel %vm88, %v210, 0.0
    %245 = vadd.xlane.f32.xlu0 %v244
    %v246 = vpop.xlane.xlu0 %245
    %v247 = vsel %vm88, %v211, 0.0
    %248 = vadd.xlane.f32.xlu0 %v247
    %v249 = vpop.xlane.xlu0 %248
    %v250 = vsel %vm88, %v212, 0.0
    %251 = vadd.xlane.f32.xlu0 %v250
    %v252 = vpop.xlane.xlu0 %251
    %v253 = vsel %vm88, %v213, 0.0
    %254 = vadd.xlane.f32.xlu0 %v253
    %v255 = vpop.xlane.xlu0 %254
    %v256 = vsel %vm88, %v214, 0.0
    %257 = vadd.xlane.f32.xlu0 %v256
    %v258 = vpop.xlane.xlu0 %257
    %v259 = vsel %vm88, %v215, 0.0
    %260 = vadd.xlane.f32.xlu0 %v259
    %v261 = vpop.xlane.xlu0 %260
    %v262 = vsel %vm88, %v216, 0.0
    %263 = vadd.xlane.f32.xlu0 %v262
    %v264 = vpop.xlane.xlu0 %263
    %v265 = vmax.f32 %v155, 1e-16
    %v266 = vmax.f32 %v158, 1e-16
    %v267 = vmax.f32 %v161, 1e-16
    %v268 = vmax.f32 %v164, 1e-16
    %v269 = vmax.f32 %v167, 1e-16
    %v270 = vmax.f32 %v170, 1e-16
    %v271 = vmax.f32 %v173, 1e-16
    %v272 = vmax.f32 %v176, 1e-16
    %v273 = vmax.f32 %v179, 1e-16
    %v274 = vmax.f32 %v182, 1e-16
    %v275 = vmax.f32 %v185, 1e-16
    %v276 = vmax.f32 %v188, 1e-16
    %v277 = vmax.f32 %v191, 1e-16
    %v278 = vmax.f32 %v194, 1e-16
    %v279 = vmax.f32 %v197, 1e-16
    %v280 = vmax.f32 %v200, 1e-16
    %v281 = vmax.f32 %v219, 1e-16
    %v282 = vmax.f32 %v222, 1e-16
    %v283 = vmax.f32 %v225, 1e-16
    %v284 = vmax.f32 %v228, 1e-16
    %v285 = vmax.f32 %v231, 1e-16
    %v286 = vmax.f32 %v234, 1e-16
    %v287 = vmax.f32 %v237, 1e-16
    %v288 = vmax.f32 %v240, 1e-16
    %v289 = vmax.f32 %v243, 1e-16
    %v290 = vmax.f32 %v246, 1e-16
    %v291 = vmax.f32 %v249, 1e-16
    %v292 = vmax.f32 %v252, 1e-16
    %v293 = vmax.f32 %v255, 1e-16
    %v294 = vmax.f32 %v258, 1e-16
    %v295 = vmax.f32 %v261, 1e-16
    %v296 = vmax.f32 %v264, 1e-16
    %v297 = vmul.f32 %v265, %v281
    %v298 = vmul.f32 %v266, %v282
    %v299 = vmul.f32 %v267, %v283
    %v300 = vmul.f32 %v268, %v284
    %v301 = vmul.f32 %v269, %v285
    %v302 = vmul.f32 %v270, %v286
    %v303 = vmul.f32 %v271, %v287
    %v304 = vmul.f32 %v272, %v288
    %v305 = vmul.f32 %v273, %v289
    %v306 = vmul.f32 %v274, %v290
    %v307 = vmul.f32 %v275, %v291
    %v308 = vmul.f32 %v276, %v292
    %v309 = vmul.f32 %v277, %v293
    %v310 = vmul.f32 %v278, %v294
    %v311 = vmul.f32 %v279, %v295
    %v312 = vmul.f32 %v280, %v296
    %v313 = vrsqrt.pop %v297
    %v314 = vrsqrt.pop %v298
    %v315 = vrsqrt.pop %v299
    %v316 = vrsqrt.pop %v300
    %v317 = vrsqrt.pop %v301
    %v318 = vrsqrt.pop %v302
    %v319 = vrsqrt.pop %v303
    %v320 = vrsqrt.pop %v304
    %v321 = vrsqrt.pop %v305
    %v322 = vrsqrt.pop %v306
    %v323 = vrsqrt.pop %v307
    %v324 = vrsqrt.pop %v308
    %v325 = vrsqrt.pop %v309
    %v326 = vrsqrt.pop %v310
    %v327 = vrsqrt.pop %v311
    %v328 = vrsqrt.pop %v312
    %v329 = vmul.f32 %v91, %v313
    %v330 = vmul.f32 %v94, %v314
    %v331 = vmul.f32 %v97, %v315
    %v332 = vmul.f32 %v100, %v316
    %v333 = vmul.f32 %v103, %v317
    %v334 = vmul.f32 %v106, %v318
    %v335 = vmul.f32 %v109, %v319
    %v336 = vmul.f32 %v112, %v320
    %v337 = vmul.f32 %v115, %v321
    %v338 = vmul.f32 %v118, %v322
    %v339 = vmul.f32 %v121, %v323
    %v340 = vmul.f32 %v124, %v324
    %v341 = vmul.f32 %v127, %v325
    %v342 = vmul.f32 %v130, %v326
    %v343 = vmul.f32 %v133, %v327
    %v344 = vmul.f32 %v136, %v328
    %v345 = vsub.f32 1.0, %v329
    %v346 = vsub.f32 1.0, %v330
    %v347 = vsub.f32 1.0, %v331
    %v348 = vsub.f32 1.0, %v332
    %v349 = vsub.f32 1.0, %v333
    %v350 = vsub.f32 1.0, %v334
    %v351 = vsub.f32 1.0, %v335
    %v352 = vsub.f32 1.0, %v336
    %v353 = vsub.f32 1.0, %v337
    %v354 = vsub.f32 1.0, %v338
    %v355 = vsub.f32 1.0, %v339
    %v356 = vsub.f32 1.0, %v340
    %v357 = vsub.f32 1.0, %v341
    %v358 = vsub.f32 1.0, %v342
    %v359 = vsub.f32 1.0, %v343
    %v360 = vsub.f32 1.0, %v344
    %v377 = vlaneseq
    %v378 = vand.u32 %v377, 127
    %v379 = vlaneseq
    %v380 = vshrl.u32 %v379, 7
    %v381 = vsub.s32 %v378, %v380
    %v382 = vrot.slane %v345, %v381
    %v383 = vadd.s32 %v378, 4294967288
    %v384 = vlaneseq
    %v385 = vshrl.u32 %v384, 7
    %v386 = vsub.s32 %v383, %v385
    %v387 = vrot.slane %v346, %v386
    %vm388 = vcmask 130112
    %v389 = vsel %vm388, %v387, %v382
    %v390 = vadd.s32 %v378, 4294967280
    %v391 = vlaneseq
    %v392 = vshrl.u32 %v391, 7
    %v393 = vsub.s32 %v390, %v392
    %v394 = vrot.slane %v347, %v393
    %vm395 = vcmask 195712
    %v396 = vsel %vm395, %v394, %v389
    %v397 = vadd.s32 %v378, 4294967272
    %v398 = vlaneseq
    %v399 = vshrl.u32 %v398, 7
    %v400 = vsub.s32 %v397, %v399
    %v401 = vrot.slane %v348, %v400
    %vm402 = vcmask 261312
    %v403 = vsel %vm402, %v401, %v396
    %v404 = vadd.s32 %v378, 4294967264
    %v405 = vlaneseq
    %v406 = vshrl.u32 %v405, 7
    %v407 = vsub.s32 %v404, %v406
    %v408 = vrot.slane %v349, %v407
    %vm409 = vcmask 326912
    %v410 = vsel %vm409, %v408, %v403
    %v411 = vadd.s32 %v378, 4294967256
    %v412 = vlaneseq
    %v413 = vshrl.u32 %v412, 7
    %v414 = vsub.s32 %v411, %v413
    %v415 = vrot.slane %v350, %v414
    %vm416 = vcmask 392512
    %v417 = vsel %vm416, %v415, %v410
    %v418 = vadd.s32 %v378, 4294967248
    %v419 = vlaneseq
    %v420 = vshrl.u32 %v419, 7
    %v421 = vsub.s32 %v418, %v420
    %v422 = vrot.slane %v351, %v421
    %vm423 = vcmask 458112
    %v424 = vsel %vm423, %v422, %v417
    %v425 = vadd.s32 %v378, 4294967240
    %v426 = vlaneseq
    %v427 = vshrl.u32 %v426, 7
    %v428 = vsub.s32 %v425, %v427
    %v429 = vrot.slane %v352, %v428
    %vm430 = vcmask 523712
    %v431 = vsel %vm430, %v429, %v424
    %v432 = vadd.s32 %v378, 4294967232
    %v433 = vlaneseq
    %v434 = vshrl.u32 %v433, 7
    %v435 = vsub.s32 %v432, %v434
    %v436 = vrot.slane %v353, %v435
    %vm437 = vcmask 589312
    %v438 = vsel %vm437, %v436, %v431
    %v439 = vadd.s32 %v378, 4294967224
    %v440 = vlaneseq
    %v441 = vshrl.u32 %v440, 7
    %v442 = vsub.s32 %v439, %v441
    %v443 = vrot.slane %v354, %v442
    %vm444 = vcmask 654912
    %v445 = vsel %vm444, %v443, %v438
    %v446 = vadd.s32 %v378, 4294967216
    %v447 = vlaneseq
    %v448 = vshrl.u32 %v447, 7
    %v449 = vsub.s32 %v446, %v448
    %v450 = vrot.slane %v355, %v449
    %vm451 = vcmask 720512
    %v452 = vsel %vm451, %v450, %v445
    %v453 = vadd.s32 %v378, 4294967208
    %v454 = vlaneseq
    %v455 = vshrl.u32 %v454, 7
    %v456 = vsub.s32 %v453, %v455
    %v457 = vrot.slane %v356, %v456
    %vm458 = vcmask 786112
    %v459 = vsel %vm458, %v457, %v452
    %v460 = vadd.s32 %v378, 4294967200
    %v461 = vlaneseq
    %v462 = vshrl.u32 %v461, 7
    %v463 = vsub.s32 %v460, %v462
    %v464 = vrot.slane %v357, %v463
    %vm465 = vcmask 851712
    %v466 = vsel %vm465, %v464, %v459
    %v467 = vadd.s32 %v378, 4294967192
    %v468 = vlaneseq
    %v469 = vshrl.u32 %v468, 7
    %v470 = vsub.s32 %v467, %v469
    %v471 = vrot.slane %v358, %v470
    %vm472 = vcmask 917312
    %v473 = vsel %vm472, %v471, %v466
    %v474 = vadd.s32 %v378, 4294967184
    %v475 = vlaneseq
    %v476 = vshrl.u32 %v475, 7
    %v477 = vsub.s32 %v474, %v476
    %v478 = vrot.slane %v359, %v477
    %vm479 = vcmask 982912
    %v480 = vsel %vm479, %v478, %v473
    %v481 = vadd.s32 %v378, 4294967176
    %v482 = vlaneseq
    %v483 = vshrl.u32 %v482, 7
    %v484 = vsub.s32 %v481, %v483
    %v485 = vrot.slane %v360, %v484
    %vm486 = vcmask 1048512
    %v487 = vsel %vm486, %v485, %v480
    %489 = vst [vmem:[#allocation10] sm:$0x1] %v487
    // Predicated region
    $region18: #{tpu_custom_call.1} parent=1 // pred_check
      _
    $region19: #{tpu_custom_call.1} parent=1 // pred_check_branch
      %491 = sbr.rel (0) target = $region21
    $region20: #{tpu_custom_call.1} parent=1 // pred_region
      %s493 = ssub.s32 16, 16
      %494 = vsyncadd [#allocation7], %s493
      %s496 = sshll.u32 [#allocation10], 4
      %s497 = int_to_ptr.vmem [resolvable:$true] %s496
      %499 = dma.vmem_to_hbm [thread:$0]  %s497, 16, %s2, [#allocation7]
    $region21: #{tpu_custom_call.1} parent=1 // pred_fallthru
      _
    // Predicated region
    $region22: #{tpu_custom_call.1} parent=1 // pred_check
      _
    $region23: #{tpu_custom_call.1} parent=1 // pred_check_branch
      %501 = sbr.rel (0) target = $region25
    $region24: #{tpu_custom_call.1} parent=1 // pred_region
      %502 = dma.done [#allocation7], 16
    $region25: #{tpu_custom_call.1} parent=1 // pred_fallthru
      _
    %503 = vsyncpa [#allocation6], 1
    %504 = vsyncpa [#allocation9], 1
    %505 = vsyncpa [#allocation7], 1

</llo_original>
